<compile_context>
chip_gen: v5e
topology: v5e:2x2
jax: 0.10.0
libtpu: 0.0.40
codegen_flags: <defaults>
</compile_context>

<pallas_src>
import functools

import jax
import jax.numpy as jnp
from jax import lax
from jax.experimental import pallas as pl
from jax.experimental.pallas import tpu as pltpu


_ONEHOT_MAX_VOCAB = 2048            # one-hot MXU gather only below this vocab size
_ONEHOT_MAX_BYTES = 8 * 1024 * 1024  # cap on the (T, V) one-hot intermediate
_MAX_INFLIGHT_DMAS = 64             # outstanding row DMAs on the HBM-gather path
_SMEM_IDX_TOKEN_CAP = 64 * 1024     # tokens per pallas_call when ids go via scalar prefetch


def _round_up(x: int, m: int) -> int:
    return ((x + m - 1) // m) * m


def _round_down(x: int, m: int) -> int:
    return (x // m) * m


def _pow2_floor(x: int) -> int:
    return 1 << (x.bit_length() - 1)


def _vmem_capacity_bytes() -> int:
    try:
        info = pltpu.get_tpu_info()
        return int(getattr(info, "vmem_capacity_bytes", 64 << 20))
    except Exception:
        return 64 << 20  # conservative: v7x has 64 MiB VMEM per TensorCore


# ----------------------------------------------------------------------------------
# Kernels
# ----------------------------------------------------------------------------------
def _onehot_gather_kernel(idx_ref, tbl_ref, out_ref, *, vocab):
    """Small-vocab gather as a one-hot matmul on the MXU (fully vectorized)."""
    ids = idx_ref[...]                                     # (T, 1) int32, VMEM block
    ids = jnp.clip(ids, 0, vocab - 1)                      # bounds-safe (torch would raise)
    iota = lax.broadcasted_iota(jnp.int32, (ids.shape[0], vocab), 1)
    onehot = (ids == iota).astype(tbl_ref.dtype)           # (T, V) exact 0/1 weights
    out_ref[...] = jnp.dot(
        onehot, tbl_ref[...], preferred_element_type=jnp.float32
    ).astype(out_ref.dtype)


def _resident_gather_kernel(idx_ref, tbl_ref, out_ref, *, block_tokens, vocab):
    """VMEM-resident table; gather 8 rows per step and store dense (8, D) slabs."""
    base = pl.program_id(0) * block_tokens
    rows_per_slab = 8
    n_slabs = block_tokens // rows_per_slab

    def body(s, carry):
        rows = []
        for j in range(rows_per_slab):                     # static, small
            tok = idx_ref[base + s * rows_per_slab + j]
            tok = jnp.minimum(jnp.maximum(tok, 0), vocab - 1)
            rows.append(tbl_ref[pl.ds(tok, 1), :])
        slab = jnp.concatenate(rows, axis=0)               # (8, D), stays in vregs
        off = pl.multiple_of(s * rows_per_slab, rows_per_slab)
        out_ref[pl.ds(off, rows_per_slab), :] = slab       # unmasked dense store
        return carry

    lax.fori_loop(0, n_slabs, body, 0)


def _hbm_gather_kernel(idx_ref, tbl_hbm, out_ref, sem, *, block_tokens, vocab, inflight):
    """Table stays in HBM; per-row DMAs straight into the output block, many in flight."""
    base = pl.program_id(0) * block_tokens

    def clamped_id(t):
        tok = idx_ref[base + t]
        return jnp.minimum(jnp.maximum(tok, 0), vocab - 1)

    def start_row(t, slot, tok):
        pltpu.make_async_copy(tbl_hbm.at[tok], out_ref.at[t], sem.at[slot]).start()

    def wait_row(t, slot):
        # Placeholder source row: only the transfer shape/byte count matters for wait().
        pltpu.make_async_copy(tbl_hbm.at[0], out_ref.at[t], sem.at[slot]).wait()

    # Prime the pipeline with `inflight` outstanding row gathers (static unroll).
    n_prime = min(inflight, block_tokens)
    for t in range(n_prime):
        start_row(t, t % inflight, clamped_id(t))

    def body(t, carry):
        slot = t & (inflight - 1)                           # inflight is a power of two
        # Hoist the next SMEM index read above the wait: DMA waits break SMEM
        # sst->sld forwarding, so keep scalar reads off the post-wait critical path.
        t_next = jnp.minimum(t + inflight, block_tokens - 1)
        tok_next = clamped_id(t_next)
        wait_row(t, slot)

        @pl.when(t + inflight < block_tokens)
        def _():
            start_row(t + inflight, slot, tok_next)

        return carry

    lax.fori_loop(0, block_tokens, body, 0)
    # TODO(synk): skip/zero-fill DMAs for runs of padding (id 0) tokens.


# ----------------------------------------------------------------------------------
# Wrapper
# ----------------------------------------------------------------------------------
def _choose_block_tokens(n_tok, row_bytes, sub, vmem_cap, vocab, itemsize, path):
    # ~2 MiB output slabs on 128 MiB-VMEM chips (v5e/v6e), ~1 MiB on v7x (64 MiB).
    slab_target = (2 << 20) if vmem_cap >= (96 << 20) else (1 << 20)
    bt = max(sub, _round_down(slab_target // max(row_bytes, 1), sub))
    bt = min(bt, 2048)
    if path == "onehot":  # bound the (T, V) one-hot intermediate
        bt = min(bt, max(sub, _round_down(_ONEHOT_MAX_BYTES // max(vocab * itemsize, 1), sub)))
    if n_tok <= bt:
        bt = _round_up(n_tok, sub)
    return bt


def _embedding_call(flat_idx, table, *, path, block_tokens, vmem_cap):
    n = int(flat_idx.shape[0])
    V, D = table.shape
    itemsize = jnp.dtype(table.dtype).itemsize
    n_blocks = n // block_tokens
    out_blk_bytes = block_tokens * D * itemsize
    table_bytes = V * D * itemsize
    gathered = n * D * itemsize

    if path == "onehot":
        kernel = functools.partial(_onehot_gather_kernel, vocab=V)
        grid_spec = pltpu.PrefetchScalarGridSpec(
            num_scalar_prefetch=0,
            grid=(n_blocks,),
            in_specs=[
                pl.BlockSpec((block_tokens, 1), lambda i: (i, 0)),   # ids, VMEM block
                pl.BlockSpec((V, D), lambda i: (0, 0)),              # full table, fetched once
            ],
            out_specs=pl.BlockSpec((block_tokens, D), lambda i: (i, 0)),
        )
        onehot_bytes = 2 * block_tokens * V * max(itemsize, 4)
        vmem_limit = 2 * table_bytes + onehot_bytes + 4 * out_blk_bytes + (4 << 20)
        cost = pl.CostEstimate(flops=int(2 * n * V * D), transcendentals=0,
                               bytes_accessed=int(table_bytes + gathered + n * 4))
        args = (flat_idx.reshape(-1, 1), table)
    elif path == "resident":
        kernel = functools.partial(_resident_gather_kernel,
                                   block_tokens=block_tokens, vocab=V)
        grid_spec = pltpu.PrefetchScalarGridSpec(
            num_scalar_prefetch=1,
            grid=(n_blocks,),
            in_specs=[pl.BlockSpec((V, D), lambda i, idx: (0, 0))],  # full table, fetched once
            out_specs=pl.BlockSpec((block_tokens, D), lambda i, idx: (i, 0)),
        )
        vmem_limit = 2 * table_bytes + 4 * out_blk_bytes + (4 << 20)
        cost = pl.CostEstimate(flops=0, transcendentals=0,
                               bytes_accessed=int(table_bytes + gathered + n * 4))
        args = (flat_idx, table)
    else:  # "hbm"
        inflight = _pow2_floor(min(_MAX_INFLIGHT_DMAS, block_tokens))
        kernel = functools.partial(_hbm_gather_kernel, block_tokens=block_tokens,
                                   vocab=V, inflight=inflight)
        grid_spec = pltpu.PrefetchScalarGridSpec(
            num_scalar_prefetch=1,
            grid=(n_blocks,),
            in_specs=[pl.BlockSpec(memory_space=pl.ANY)],            # table stays in HBM
            out_specs=pl.BlockSpec((block_tokens, D), lambda i, idx: (i, 0)),
            scratch_shapes=[pltpu.SemaphoreType.DMA((inflight,))],
        )
        vmem_limit = 4 * out_blk_bytes + (8 << 20)
        cost = pl.CostEstimate(flops=0, transcendentals=0,
                               bytes_accessed=int(2 * gathered + n * 4))
        args = (flat_idx, table)

    vmem_limit = int(min(max(vmem_limit, 32 << 20), vmem_cap - (2 << 20)))

    return pl.pallas_call(
        kernel,
        out_shape=jax.ShapeDtypeStruct((n, D), table.dtype),
        grid_spec=grid_spec,
        compiler_params=pltpu.CompilerParams(
            # Token blocks are independent -> both TensorCores on v7x; no-op on v5e/v6e.
            dimension_semantics=("parallel",),
            vmem_limit_bytes=vmem_limit,
        ),
        cost_estimate=cost,
    )(*args)


def embedding_forward(indices, table, *, block_tokens=None, force_path=None):
    """Embedding lookup: (B, S) int ids -> (B, S, D) embeddings.

    padding_idx=0 semantics are carried by the zeroed row 0 of `table`.
    """
    if force_path is not None and force_path not in ("onehot", "resident", "hbm"):
        raise ValueError(f"unknown force_path={force_path!r}")

    B, S = indices.shape
    V, D = table.shape
    n_tok = B * S
    itemsize = jnp.dtype(table.dtype).itemsize
    row_bytes = D * itemsize
    table_bytes = V * row_bytes
    vmem_cap = _vmem_capacity_bytes()

    # Generation-aware resident-table budget (table block is double-buffered).
    resident_budget = int(0.9 * (vmem_cap - (8 << 20)))
    if force_path is not None:
        path = force_path
    elif V <= _ONEHOT_MAX_VOCAB and 2 * table_bytes <= resident_budget:
        path = "onehot"
    elif 2 * table_bytes <= resident_budget:
        path = "resident"
    else:
        path = "hbm"

    sub = 16 if itemsize < 4 else 8
    flat_idx = indices.reshape(-1).astype(jnp.int32)

    if block_tokens is None:
        block_tokens = _choose_block_tokens(n_tok, row_bytes, sub, vmem_cap, V, itemsize, path)
    block_tokens = max(sub, _round_up(block_tokens, sub))

    n_pad = _round_up(n_tok, block_tokens)
    if n_pad != n_tok:
        flat_idx = jnp.pad(flat_idx, (0, n_pad - n_tok))   # pad with id 0 (padding row)

    # Resident/HBM paths scalar-prefetch ids into SMEM (1D SMEM pads to next_pow2(4N)
    # bytes), so chunk the token axis at the wrapper to bound SMEM per call.
    if path in ("resident", "hbm"):
        chunk = max(block_tokens, _round_down(max(_SMEM_IDX_TOKEN_CAP, block_tokens),
                                              block_tokens))
    else:
        chunk = n_pad

    pieces = []
    for start in range(0, n_pad, chunk):
        stop = min(start + chunk, n_pad)
        pieces.append(_embedding_call(flat_idx[start:stop], table, path=path,
                                      block_tokens=block_tokens, vmem_cap=vmem_cap))
    out = pieces[0] if len(pieces) == 1 else jnp.concatenate(pieces, axis=0)

    if n_pad != n_tok:
        out = out[:n_tok]
    return out.reshape(B, S, D)


def make_embedding_params(key, vocabulary_size, d_model):
    """Deterministic init matching nn.Embedding(V, D, padding_idx=0):
    N(0, 1) weights with row 0 zeroed."""
    w = jax.random.normal(key, (vocabulary_size, d_model), dtype=jnp.float32)
    w = w.at[0].set(0.0)  # padding_idx=0 row is zero
    return w


if __name__ == "__main__":
    VOCAB = 64
    D_MODEL = 128
    BATCH = 2
    SEQ = 8

    key = jax.random.PRNGKey(0)
    k_tbl, k_idx = jax.random.split(key)

    table = make_embedding_params(k_tbl, VOCAB, D_MODEL)
    indices = jax.random.randint(k_idx, (BATCH, SEQ), 0, VOCAB, dtype=jnp.int32)
    # Force a couple of padding tokens to exercise padding_idx=0 semantics.
    indices = indices.at[0, 0].set(0)
    indices = indices.at[1, -1].set(0)

    ref = jnp.take(table, indices, axis=0)

    outs = {
        "auto(one-hot MXU)": embedding_forward(indices, table),
        "resident row-gather": embedding_forward(indices, table, force_path="resident"),
        "hbm row-DMA gather": embedding_forward(indices, table, force_path="hbm"),
    }
    for name, out in outs.items():
        out = jax.block_until_ready(out)
        assert out.shape == (BATCH, SEQ, D_MODEL), (name, out.shape)
        assert jnp.allclose(out, ref, rtol=1e-6, atol=1e-6), f"{name}: mismatch vs reference"
        assert jnp.all(out[0, 0] == 0.0) and jnp.all(out[1, -1] == 0.0), \
            f"{name}: padding row not zero"

    print("KERNEL_OK")
</pallas_src>

<mosaic_0001>
module attributes {stable_mosaic.version = 11 : i64} {
  func.func @_onehot_gather_kernel(%arg0: i32, %arg1: memref<16x1xi32, #tpu.memory_space<vmem>>, %arg2: memref<64x128xf32, #tpu.memory_space<vmem>>, %arg3: memref<16x128xf32, #tpu.memory_space<vmem>>) attributes {dimension_semantics = [#tpu.dimension_semantics<parallel>], iteration_bounds = array<i64: 1>, scalar_prefetch = 0 : i64, scratch_operands = 0 : i64, tpu.core_type = #tpu.core_type<tc>, window_params = [{transform_indices = @transform_0, window_bounds = array<i64: 16, 1>}, {pipeline_mode = #tpu.pipeline_mode<synchronous>, transform_indices = @transform_1, window_bounds = array<i64: 64, 128>}, {transform_indices = @transform_2, window_bounds = array<i64: 16, 128>}]} {
    %c0 = arith.constant 0 : index
    %c0_0 = arith.constant 0 : index
    %0 = vector.load %arg1[%c0, %c0_0] : memref<16x1xi32, #tpu.memory_space<vmem>>, vector<16x1xi32>
    %c0_i32 = arith.constant 0 : i32
    %c63_i32 = arith.constant 63 : i32
    %1 = vector.broadcast %c0_i32 : i32 to vector<16x1xi32>
    %2 = arith.maxsi %1, %0 : vector<16x1xi32>
    %3 = vector.broadcast %c63_i32 : i32 to vector<16x1xi32>
    %4 = arith.minsi %3, %2 : vector<16x1xi32>
    %5 = tpu.iota {dimensions = array<i32: 1>} : vector<16x64xi32>
    %6 = vector.broadcast %4 : vector<16x1xi32> to vector<16x64xi32>
    %7 = arith.cmpi eq, %6, %5 : vector<16x64xi32>
    %8 = arith.extui %7 : vector<16x64xi1> to vector<16x64xi32>
    %9 = arith.sitofp %8 : vector<16x64xi32> to vector<16x64xf32>
    %c0_1 = arith.constant 0 : index
    %c0_2 = arith.constant 0 : index
    %10 = vector.load %arg2[%c0_1, %c0_2] : memref<64x128xf32, #tpu.memory_space<vmem>>, vector<64x128xf32>
    %cst = arith.constant dense<0.000000e+00> : vector<16x128xf32>
    %11 = tpu.matmul %9, %10, %cst {dimension_numbers = #tpu.dot_dimension_numbers<[1], [0], [0], [1], [0, 0, 1, 1], [], []>} : vector<16x64xf32>, vector<64x128xf32>, vector<16x128xf32> -> vector<16x128xf32>
    %c0_3 = arith.constant 0 : index
    %c0_4 = arith.constant 0 : index
    %12 = vector.load %arg3[%c0_3, %c0_4] : memref<16x128xf32, #tpu.memory_space<vmem>>, vector<16x128xf32>
    tpu.vector_store %arg3[%c0_3, %c0_4], %11 {strides = array<i32>} : memref<16x128xf32, #tpu.memory_space<vmem>>, vector<16x128xf32>,
    return
  }
  func.func @transform_0(%arg0: i32) -> (i32, i32) {
    %c0_i32 = arith.constant 0 : i32
    %c0_i32_0 = arith.constant 0 : i32
    return %arg0, %c0_i32 : i32, i32
  }
  func.func @transform_1(%arg0: i32) -> (i32, i32) {
    %c0_i32 = arith.constant 0 : i32
    %c0_i32_0 = arith.constant 0 : i32
    %c0_i32_1 = arith.constant 0 : i32
    return %c0_i32, %c0_i32_0 : i32, i32
  }
  func.func @transform_2(%arg0: i32) -> (i32, i32) {
    %c0_i32 = arith.constant 0 : i32
    %c0_i32_0 = arith.constant 0 : i32
    return %arg0, %c0_i32 : i32, i32
  }
}

</mosaic_0001>

<llo_original>
// kernel: tpu_custom_call.1
$region0: #{tpu_custom_call.1}
  #allocation0 [shape = 'u32[]', space=smem, size = 0x4, offset = 0x4, fixed_abs, tag = 'smem constant byte address 0x4 - core index']
  #allocation1 [shape = 'u32[72,128]{1,0:T(1,128)}', space=vmem, size = 0x9000, scoped, tag = 'internal scratch']
  %s0 = inlined_call_operand.vmem [shape: s32[16,1], index: 0, kind: input, shape index: {}]
  %s1 = inlined_call_operand.hbm [shape: f32[64,128], index: 1, kind: input, shape index: {}]
  %s2 = inlined_call_operand.hbm [shape: f32[16,128], index: 2, kind: output, shape index: {}]
  %s3 = sld [smem:[#allocation0]]
  $region22: #{tpu_custom_call.1} parent=0
    _
  %s5 = ssub.s32 1, %s3
  %s6 = scalar_select 0, %s5, %s3
  $region1: #{tpu_custom_call.1} parent=0
    #allocation2 [shape = 'u8[32768]{0}', space=vmem, size = 0x8000, scoped, tag = 'input window, operand 1, single buffered']
    #allocation3 [shape = 's32[1]{0}', space=sflag, size = 0x4, scoped, tag = 'scoped memory for tpu_custom_call.1']
    #allocation4 [shape = 's32[1]{0}', space=sflag, size = 0x4, scoped, tag = 'scoped memory for tpu_custom_call.1']
    #allocation5 [shape = 'u8[8192]{0}', space=vmem, size = 0x2000, scoped, tag = 'output window, operand 0, single buffered']
    %7 = vsyncpa [#allocation3], 0
    %8 = vsyncpa [#allocation4], 0
    // Predicated region
    $region2: #{tpu_custom_call.1} parent=1 // pred_check
      _
    $region3: #{tpu_custom_call.1} parent=1 // pred_check_branch
      %10 = sbr.rel (0) target = $region5
    $region4: #{tpu_custom_call.1} parent=1 // pred_region
      _
    $region5: #{tpu_custom_call.1} parent=1 // pred_fallthru
      _
    // Predicated region
    $region6: #{tpu_custom_call.1} parent=1 // pred_check
      _
    $region7: #{tpu_custom_call.1} parent=1 // pred_check_branch
      %12 = sbr.rel (0) target = $region9
    $region8: #{tpu_custom_call.1} parent=1 // pred_region
      %14 = vsyncadd [#allocation3], 0
      %s15 = sshll.u32 %s1, 4
      %s16 = int_to_ptr.hbm [resolvable:$true] %s15
      %s17 = sshll.u32 [#allocation2], 4
      %s18 = int_to_ptr.vmem [resolvable:$true] %s17
      %23 = dma.hbm_to_vmem [thread:$0]  %s16, 1024, %s18, [#allocation3], 128, 128, 8
    $region9: #{tpu_custom_call.1} parent=1 // pred_fallthru
      _
    // Predicated region
    $region10: #{tpu_custom_call.1} parent=1 // pred_check
      _
    $region11: #{tpu_custom_call.1} parent=1 // pred_check_branch
      %25 = sbr.rel (0) target = $region13
    $region12: #{tpu_custom_call.1} parent=1 // pred_region
      %27 = dma.done [#allocation3], 1024
    $region13: #{tpu_custom_call.1} parent=1 // pred_fallthru
      _
    %v28 = vld [vmem:[%s0] sm:$0xff]
    %v29 = vld [vmem:[%s0 + $0x8] sm:$0xff]
    %vm30 = vcmp.gt.s32.totalorder %v28, 0
    %v31 = vsel %vm30, %v28, 0
    %vm32 = vcmp.gt.s32.totalorder %v29, 0
    %v33 = vsel %vm32, %v29, 0
    %vm34 = vcmp.lt.s32.totalorder %v31, 63
    %v35 = vsel %vm34, %v31, 63
    %vm36 = vcmp.lt.s32.totalorder %v33, 63
    %v37 = vsel %vm36, %v33, 63
    %v38 = vlaneseq
    %v39 = vand.u32 %v38, 127
    %40 = vset.pattern.permute.xlu0 0
    %41 = vperm.xlu0 %40, %v35
    %v42 = vpop.permute.xlu0 %41
    %43 = vset.pattern.permute.xlu0 0
    %44 = vperm.xlu0 %43, %v37
    %v45 = vpop.permute.xlu0 %44
    %vm46 = vcmp.eq.s32.totalorder %v42, %v39
    %vm47 = vcmp.eq.s32.totalorder %v45, %v39
    %v48 = vsel %vm46, 1, 0
    %v49 = vsel %vm47, 1, 0
    %v50 = vcvt.s32.f32 %v48
    %v51 = vcvt.s32.f32 %v49
    %v52 = vld [vmem:[#allocation2] sm:$0xff]
    %v53 = vld [vmem:[#allocation2 + $0x8] sm:$0xff]
    %v54 = vld [vmem:[#allocation2 + $0x10] sm:$0xff]
    %v55 = vld [vmem:[#allocation2 + $0x18] sm:$0xff]
    %v56 = vld [vmem:[#allocation2 + $0x20] sm:$0xff]
    %v57 = vld [vmem:[#allocation2 + $0x28] sm:$0xff]
    %v58 = vld [vmem:[#allocation2 + $0x30] sm:$0xff]
    %v59 = vld [vmem:[#allocation2 + $0x38] sm:$0xff]
    %vm60 = vcmask 523264
    %v62 = vsel %vm60, %v50, 0
    %v65 = vsel %vm60, %v51, 0
    %67 = vmatpush.msra.mxu0 0.0
    %68 = vmatpush.msra.mxu0 0.0
    %69 = vmatpush.msra.mxu0 0.0
    %70 = vmatpush.msra.mxu0 0.0
    %71 = vmatpush.msra.mxu0 0.0
    %72 = vmatpush.msra.mxu0 0.0
    %73 = vmatpush.msra.mxu0 0.0
    %74 = vmatpush.msra.mxu0 0.0
    %75 = vmatpush.msra.mxu0 %v59
    %76 = vmatpush.msra.mxu0 %v58
    %77 = vmatpush.msra.mxu0 %v57
    %78 = vmatpush.msra.mxu0 %v56
    %79 = vmatpush.msra.mxu0 %v55
    %80 = vmatpush.msra.mxu0 %v54
    %81 = vmatpush.msra.mxu0 %v53
    %82 = vmatpush.msra.mxu0 %v52
    %83 = vmatmul.f32.gmra.mxu0 %v62
    %v84 = vpop.f32.mrf.mxu0
    %v85 = vadd.f32 0.0, %v84
    %86 = vmatmul.f32.gmra.mxu0 %v65
    %v87 = vpop.f32.mrf.mxu0
    %v88 = vadd.f32 0.0, %v87
    %89 = vdwg.mxu0
    %90 = vst [vmem:[#allocation5] sm:$0xff] %v85
    %91 = vst [vmem:[#allocation5 + $0x8] sm:$0xff] %v88
    // Predicated region
    $region14: #{tpu_custom_call.1} parent=1 // pred_check
      _
    $region15: #{tpu_custom_call.1} parent=1 // pred_check_branch
      %93 = sbr.rel (0) target = $region17
    $region16: #{tpu_custom_call.1} parent=1 // pred_region
      %95 = vsyncadd [#allocation4], 0
      %s96 = sshll.u32 [#allocation5], 4
      %s97 = int_to_ptr.vmem [resolvable:$true] %s96
      %s98 = sshll.u32 %s2, 4
      %s99 = int_to_ptr.hbm [resolvable:$true] %s98
      %104 = dma.vmem_to_hbm [thread:$0]  %s97, 256, %s99, [#allocation4], 128, 128, 8
    $region17: #{tpu_custom_call.1} parent=1 // pred_fallthru
      _
    // Predicated region
    $region18: #{tpu_custom_call.1} parent=1 // pred_check
      _
    $region19: #{tpu_custom_call.1} parent=1 // pred_check_branch
      %106 = sbr.rel (0) target = $region21
    $region20: #{tpu_custom_call.1} parent=1 // pred_region
      %108 = dma.done [#allocation4], 256
    $region21: #{tpu_custom_call.1} parent=1 // pred_fallthru
      _
    %109 = vsyncpa [#allocation3], 1
    %110 = vsyncpa [#allocation4], 1

</llo_original>
